<compile_context>
chip_gen: v7x
topology: tpu7x:2x2x1
jax: 0.10.0
libtpu: 0.0.40
codegen_flags: <defaults>
</compile_context>

<pallas_src>
import jax
import jax.numpy as jnp
from jax.experimental import pallas as pl
from jax.experimental.pallas import tpu as pltpu

LATENT_DIMS = 2
IN_FEATURES = 20   # flattened input feature size expected by linear1
HIDDEN = 15        # linear1 output size


def _round_up(n, m):
    return ((n + m - 1) // m) * m


def encoder_kernel(xT_ref, w1T_ref, b1_ref, w2T_ref, b2_ref, outT_ref):
    # xT_ref: (20, TB)   w1T_ref: (15, 20)  b1_ref: (15, 1)
    # w2T_ref: (2, 15)   b2_ref: (2, 1)     outT_ref: (2, TB)
    xT = xT_ref[...]

    # linear1 + ReLU   (hT = W1 @ x^T, batch on the lane / MXU-N axis)
    hT = jnp.dot(w1T_ref[...], xT, preferred_element_type=jnp.float32) + b1_ref[...]
    hT = jnp.maximum(hT, 0.0)  # (15, TB)

    # linear2 (weight pre-sliced to its first 15 rows in the wrapper)
    outT_ref[...] = (
        jnp.dot(w2T_ref[...], hT, preferred_element_type=jnp.float32) + b2_ref[...]
    ).astype(outT_ref.dtype)


def encoder_forward(x, w1, b1, w2, b2, *, tb=512):
    """x: any shape (B, ...) whose trailing dims flatten to 20 features.

    w1: (20, 15), b1: (1, 15), w2: (20, 2), b2: (1, 2)   (x @ W + b convention)
    Returns (B, 2).
    """
    B = x.shape[0]
    x2d = x.reshape(B, -1).astype(jnp.float32)  # torch.flatten(x, start_dim=1)
    assert x2d.shape[1] == IN_FEATURES, x2d.shape

    # Batch tile: multiple of 128 (lane width), capped so tiny batches don't
    # over-pad; pad B up to a whole number of tiles (extra columns are zeros
    # and get sliced off the output).
    tb = min(tb, _round_up(B, 128))
    B_pad = _round_up(B, tb)

    # Lane-dense, transposed layout prepared once in the wrapper (XLA side).
    xT = jnp.pad(x2d, ((0, B_pad - B), (0, 0))).T          # (20, B_pad)
    w1T = jnp.asarray(w1, jnp.float32).T                    # (15, 20)
    b1c = jnp.asarray(b1, jnp.float32).reshape(HIDDEN, 1)   # (15, 1)
    w2T = jnp.asarray(w2, jnp.float32)[:HIDDEN, :].T        # (2, 15) pre-sliced
    b2c = jnp.asarray(b2, jnp.float32).reshape(LATENT_DIMS, 1)

    grid = (B_pad // tb,)

    flops = 2 * B_pad * (IN_FEATURES * HIDDEN + HIDDEN * LATENT_DIMS)
    bytes_accessed = 4 * (
        IN_FEATURES * B_pad            # stream x
        + LATENT_DIMS * B_pad          # write out
        + HIDDEN * IN_FEATURES + HIDDEN
        + LATENT_DIMS * HIDDEN + LATENT_DIMS
    )

    outT = pl.pallas_call(
        encoder_kernel,
        out_shape=jax.ShapeDtypeStruct((LATENT_DIMS, B_pad), jnp.float32),
        grid_spec=pltpu.PrefetchScalarGridSpec(
            num_scalar_prefetch=0,
            grid=grid,
            in_specs=[
                # x streams per batch tile; weights/biases pinned in VMEM
                pl.BlockSpec((IN_FEATURES, tb), lambda i: (0, i)),
                pl.BlockSpec((HIDDEN, IN_FEATURES), lambda i: (0, 0)),
                pl.BlockSpec((HIDDEN, 1), lambda i: (0, 0)),
                pl.BlockSpec((LATENT_DIMS, HIDDEN), lambda i: (0, 0)),
                pl.BlockSpec((LATENT_DIMS, 1), lambda i: (0, 0)),
            ],
            out_specs=pl.BlockSpec((LATENT_DIMS, tb), lambda i: (0, i)),
        ),
        compiler_params=pltpu.CompilerParams(
            dimension_semantics=("parallel",),      # shards tiles across v7x TCs
            vmem_limit_bytes=32 * 1024 * 1024,      # fits v5e/v6e/v7x w/ headroom
        ),
        cost_estimate=pl.CostEstimate(
            flops=flops, transcendentals=0, bytes_accessed=bytes_accessed
        ),
    )(xT, w1T, b1c, w2T, b2c)

    return outT[:, :B].T  # (B, 2)


def init_params(key):
    """Deterministic PyTorch-style Linear init: U(-1/sqrt(fan_in), 1/sqrt(fan_in))."""
    k1, k2, k3, k4 = jax.random.split(key, 4)
    bound1 = 1.0 / jnp.sqrt(float(IN_FEATURES))
    bound2 = 1.0 / jnp.sqrt(float(IN_FEATURES))  # linear2 declared with in_features=20
    w1 = jax.random.uniform(k1, (IN_FEATURES, HIDDEN), jnp.float32, -bound1, bound1)
    b1 = jax.random.uniform(k2, (1, HIDDEN), jnp.float32, -bound1, bound1)
    w2 = jax.random.uniform(k3, (IN_FEATURES, LATENT_DIMS), jnp.float32, -bound2, bound2)
    b2 = jax.random.uniform(k4, (1, LATENT_DIMS), jnp.float32, -bound2, bound2)
    return w1, b1, w2, b2


if __name__ == "__main__":
    key = jax.random.PRNGKey(0)
    kx, kp = jax.random.split(key)

    # Small input: batch=2, shape (2, 4, 5) -> flattens to (2, 20)
    x = jax.random.normal(kx, (2, 4, 5), jnp.float32)
    w1, b1, w2, b2 = init_params(kp)

    out = encoder_forward(x, w1, b1, w2, b2)
    jax.block_until_ready(out)

    # Pure-JAX reference check of the same semantics.
    x2d = x.reshape(2, -1)
    h_ref = jnp.maximum(x2d @ w1 + b1, 0.0)
    ref = h_ref @ w2[:HIDDEN, :] + b2
    assert out.shape == (2, LATENT_DIMS), out.shape
    assert jnp.allclose(out, ref, atol=1e-5), (out, ref)

    print("KERNEL_OK")
</pallas_src>

<mosaic_0001>
module attributes {stable_mosaic.version = 11 : i64} {
  func.func @encoder_kernel(%arg0: i32, %arg1: memref<20x128xf32, #tpu.memory_space<vmem>>, %arg2: memref<15x20xf32, #tpu.memory_space<vmem>>, %arg3: memref<15x1xf32, #tpu.memory_space<vmem>>, %arg4: memref<2x15xf32, #tpu.memory_space<vmem>>, %arg5: memref<2x1xf32, #tpu.memory_space<vmem>>, %arg6: memref<2x128xf32, #tpu.memory_space<vmem>>) attributes {dimension_semantics = [#tpu.dimension_semantics<parallel>], iteration_bounds = array<i64: 1>, scalar_prefetch = 0 : i64, scratch_operands = 0 : i64, tpu.core_type = #tpu.core_type<tc>, window_params = [{transform_indices = @transform_0, window_bounds = array<i64: 20, 128>}, {pipeline_mode = #tpu.pipeline_mode<synchronous>, transform_indices = @transform_1, window_bounds = array<i64: 15, 20>}, {pipeline_mode = #tpu.pipeline_mode<synchronous>, transform_indices = @transform_2, window_bounds = array<i64: 15, 1>}, {pipeline_mode = #tpu.pipeline_mode<synchronous>, transform_indices = @transform_3, window_bounds = array<i64: 2, 15>}, {pipeline_mode = #tpu.pipeline_mode<synchronous>, transform_indices = @transform_4, window_bounds = array<i64: 2, 1>}, {transform_indices = @transform_5, window_bounds = array<i64: 2, 128>}]} {
    %c0 = arith.constant 0 : index
    %c0_0 = arith.constant 0 : index
    %0 = vector.load %arg1[%c0, %c0_0] : memref<20x128xf32, #tpu.memory_space<vmem>>, vector<20x128xf32>
    %c0_1 = arith.constant 0 : index
    %c0_2 = arith.constant 0 : index
    %1 = vector.load %arg2[%c0_1, %c0_2] : memref<15x20xf32, #tpu.memory_space<vmem>>, vector<15x20xf32>
    %cst = arith.constant dense<0.000000e+00> : vector<15x128xf32>
    %2 = tpu.matmul %1, %0, %cst {dimension_numbers = #tpu.dot_dimension_numbers<[1], [0], [0], [1], [0, 0, 1, 1], [], []>} : vector<15x20xf32>, vector<20x128xf32>, vector<15x128xf32> -> vector<15x128xf32>
    %c0_3 = arith.constant 0 : index
    %c0_4 = arith.constant 0 : index
    %3 = vector.load %arg3[%c0_3, %c0_4] : memref<15x1xf32, #tpu.memory_space<vmem>>, vector<15x1xf32>
    %4 = vector.broadcast %3 : vector<15x1xf32> to vector<15x128xf32>
    %5 = arith.addf %2, %4 : vector<15x128xf32>
    %cst_5 = arith.constant 0.000000e+00 : f32
    %6 = vector.broadcast %cst_5 : f32 to vector<15x128xf32>
    %7 = arith.maximumf %5, %6 : vector<15x128xf32>
    %c0_6 = arith.constant 0 : index
    %c0_7 = arith.constant 0 : index
    %8 = vector.load %arg4[%c0_6, %c0_7] : memref<2x15xf32, #tpu.memory_space<vmem>>, vector<2x15xf32>
    %cst_8 = arith.constant dense<0.000000e+00> : vector<2x128xf32>
    %9 = tpu.matmul %8, %7, %cst_8 {dimension_numbers = #tpu.dot_dimension_numbers<[1], [0], [0], [1], [0, 0, 1, 1], [], []>} : vector<2x15xf32>, vector<15x128xf32>, vector<2x128xf32> -> vector<2x128xf32>
    %c0_9 = arith.constant 0 : index
    %c0_10 = arith.constant 0 : index
    %10 = vector.load %arg5[%c0_9, %c0_10] : memref<2x1xf32, #tpu.memory_space<vmem>>, vector<2x1xf32>
    %11 = vector.broadcast %10 : vector<2x1xf32> to vector<2x128xf32>
    %12 = arith.addf %9, %11 : vector<2x128xf32>
    %c0_11 = arith.constant 0 : index
    %c0_12 = arith.constant 0 : index
    %13 = vector.load %arg6[%c0_11, %c0_12] : memref<2x128xf32, #tpu.memory_space<vmem>>, vector<2x128xf32>
    tpu.vector_store %arg6[%c0_11, %c0_12], %12 {strides = array<i32>} : memref<2x128xf32, #tpu.memory_space<vmem>>, vector<2x128xf32>,
    return
  }
  func.func @transform_0(%arg0: i32) -> (i32, i32) {
    %c0_i32 = arith.constant 0 : i32
    %c0_i32_0 = arith.constant 0 : i32
    return %c0_i32, %arg0 : i32, i32
  }
  func.func @transform_1(%arg0: i32) -> (i32, i32) {
    %c0_i32 = arith.constant 0 : i32
    %c0_i32_0 = arith.constant 0 : i32
    %c0_i32_1 = arith.constant 0 : i32
    return %c0_i32, %c0_i32_0 : i32, i32
  }
  func.func @transform_2(%arg0: i32) -> (i32, i32) {
    %c0_i32 = arith.constant 0 : i32
    %c0_i32_0 = arith.constant 0 : i32
    %c0_i32_1 = arith.constant 0 : i32
    return %c0_i32, %c0_i32_0 : i32, i32
  }
  func.func @transform_3(%arg0: i32) -> (i32, i32) {
    %c0_i32 = arith.constant 0 : i32
    %c0_i32_0 = arith.constant 0 : i32
    %c0_i32_1 = arith.constant 0 : i32
    return %c0_i32, %c0_i32_0 : i32, i32
  }
  func.func @transform_4(%arg0: i32) -> (i32, i32) {
    %c0_i32 = arith.constant 0 : i32
    %c0_i32_0 = arith.constant 0 : i32
    %c0_i32_1 = arith.constant 0 : i32
    return %c0_i32, %c0_i32_0 : i32, i32
  }
  func.func @transform_5(%arg0: i32) -> (i32, i32) {
    %c0_i32 = arith.constant 0 : i32
    %c0_i32_0 = arith.constant 0 : i32
    return %c0_i32, %arg0 : i32, i32
  }
}

</mosaic_0001>

<llo_original>
// kernel: tpu_custom_call.1
$region0: #{tpu_custom_call.1}
  #allocation0 [shape = 'u32[]', space=smem, size = 0x4, offset = 0x4, fixed_abs, tag = 'smem constant byte address 0x4 - core index']
  #allocation1 [shape = 'u32[144,128]{1,0:T(1,128)}', space=vmem, size = 0x12000, scoped, tag = 'internal scratch']
  %s0 = inlined_call_operand.hbm [shape: f32[20,128], index: 0, kind: input, shape index: {}]
  %s1 = inlined_call_operand.vmem [shape: f32[15,20], index: 1, kind: input, shape index: {}]
  %s2 = inlined_call_operand.vmem [shape: f32[15,1], index: 2, kind: input, shape index: {}]
  %s3 = inlined_call_operand.vmem [shape: f32[2,15], index: 3, kind: input, shape index: {}]
  %s4 = inlined_call_operand.vmem [shape: f32[2,1], index: 4, kind: input, shape index: {}]
  %s5 = inlined_call_operand.hbm [shape: f32[2,128], index: 5, kind: output, shape index: {}]
  %s6 = sld [smem:[#allocation0]]
  $region34: #{tpu_custom_call.1} parent=0
    _
  %s8 = ssub.s32 1, %s6
  %s9 = scalar_select 0, %s8, %s6
  $region1: #{tpu_custom_call.1} parent=0
    #allocation2 [shape = 'u8[12288]{0}', space=vmem, size = 0x3000, scoped, tag = 'input window, operand 0, single buffered']
    #allocation3 [shape = 's32[1]{0}', space=sflag, size = 0x4, scoped, tag = 'scoped memory for tpu_custom_call.1']
    #allocation4 [shape = 's32[1]{0}', space=sflag, size = 0x4, scoped, tag = 'scoped memory for tpu_custom_call.1']
    #allocation5 [shape = 'u8[1024]{0}', space=vmem, size = 0x400, scoped, tag = 'output window, operand 0, single buffered']
    %10 = vsyncpa [#allocation3], 0
    %11 = vsyncpa [#allocation4], 0
    // Predicated region
    $region2: #{tpu_custom_call.1} parent=1 // pred_check
      _
    $region3: #{tpu_custom_call.1} parent=1 // pred_check_branch
      %13 = sbr.rel (0) target = $region5
    $region4: #{tpu_custom_call.1} parent=1 // pred_region
      %s15 = ssub.s32 384, 384
      %16 = vsyncadd [#allocation3], %s15
      %s17 = sshll.u32 [#allocation2], 4
      %s18 = int_to_ptr.vmem [resolvable:$true] %s17
      %23 = dma.hbm_to_vmem [thread:$0]  %s0, 384, %s18, [#allocation3], 128, 128, 8
    $region5: #{tpu_custom_call.1} parent=1 // pred_fallthru
      _
    // Predicated region
    $region6: #{tpu_custom_call.1} parent=1 // pred_check
      _
    $region7: #{tpu_custom_call.1} parent=1 // pred_check_branch
      %25 = sbr.rel (0) target = $region9
    $region8: #{tpu_custom_call.1} parent=1 // pred_region
      _
    $region9: #{tpu_custom_call.1} parent=1 // pred_fallthru
      _
    // Predicated region
    $region10: #{tpu_custom_call.1} parent=1 // pred_check
      _
    $region11: #{tpu_custom_call.1} parent=1 // pred_check_branch
      %27 = sbr.rel (0) target = $region13
    $region12: #{tpu_custom_call.1} parent=1 // pred_region
      _
    $region13: #{tpu_custom_call.1} parent=1 // pred_fallthru
      _
    // Predicated region
    $region14: #{tpu_custom_call.1} parent=1 // pred_check
      _
    $region15: #{tpu_custom_call.1} parent=1 // pred_check_branch
      %29 = sbr.rel (0) target = $region17
    $region16: #{tpu_custom_call.1} parent=1 // pred_region
      _
    $region17: #{tpu_custom_call.1} parent=1 // pred_fallthru
      _
    // Predicated region
    $region18: #{tpu_custom_call.1} parent=1 // pred_check
      _
    $region19: #{tpu_custom_call.1} parent=1 // pred_check_branch
      %31 = sbr.rel (0) target = $region21
    $region20: #{tpu_custom_call.1} parent=1 // pred_region
      _
    $region21: #{tpu_custom_call.1} parent=1 // pred_fallthru
      _
    // Predicated region
    $region22: #{tpu_custom_call.1} parent=1 // pred_check
      _
    $region23: #{tpu_custom_call.1} parent=1 // pred_check_branch
      %33 = sbr.rel (0) target = $region25
    $region24: #{tpu_custom_call.1} parent=1 // pred_region
      %34 = dma.done [#allocation3], 384
    $region25: #{tpu_custom_call.1} parent=1 // pred_fallthru
      _
    %v35 = vld [vmem:[#allocation2] sm:$0xff]
    %v36 = vld [vmem:[#allocation2 + $0x8] sm:$0xff]
    %v37 = vld [vmem:[#allocation2 + $0x10] sm:$0xf]
    %v38 = vld [vmem:[%s1] sm:$0xff]
    %v39 = vld [vmem:[%s1 + $0x8] sm:$0x7f]
    %v40 = vld [vmem:[%s2] sm:$0xff]
    %v41 = vld [vmem:[%s2 + $0x8] sm:$0x7f]
    %43 = vset.pattern.permute.xlu0 0
    %44 = vperm.xlu0 %43, %v40
    %v45 = vpop.permute.xlu0 %44
    %48 = vset.pattern.permute.xlu0 0
    %49 = vperm.xlu0 %48, %v41
    %v50 = vpop.permute.xlu0 %49
    %vm52 = vcmask 162816
    %v54 = vsel %vm52, %v38, 0
    %v57 = vsel %vm52, %v39, 0
    %vm59 = vcmask 1043456
    %v61 = vsel %vm59, %v37, 0
    %63 = vmatprep.subr.mxu0 0.0
    %64 = vmatpush1.msra.mxu0 %v35
    %65 = vmatprep.subr.mxu0 0.0
    %66 = vmatpush1.msra.mxu0 %v36
    %67 = vmatprep.subr.mxu0 0.0
    %68 = vmatpush1.msra.mxu0 %v61
    %69 = vmatprep.subr.mxu0 0.0
    %70 = vmatpush1.msra.mxu0 0.0
    %71 = vmatprep.subr.mxu0 0.0
    %72 = vmatpush1.msra.mxu0 0.0
    %73 = vmatprep.subr.mxu0 0.0
    %74 = vmatpush1.msra.mxu0 0.0
    %75 = vmatprep.subr.mxu0 0.0
    %76 = vmatpush1.msra.mxu0 0.0
    %77 = vmatprep.subr.mxu0 0.0
    %78 = vmatpush1.msra.mxu0 0.0
    %79 = vmatprep.subr.mxu0 0.0
    %80 = vmatpush1.msra.mxu0 0.0
    %81 = vmatprep.subr.mxu0 0.0
    %82 = vmatpush1.msra.mxu0 0.0
    %83 = vmatprep.subr.mxu0 0.0
    %84 = vmatpush1.msra.mxu0 0.0
    %85 = vmatprep.subr.mxu0 0.0
    %86 = vmatpush1.msra.mxu0 0.0
    %87 = vmatprep.subr.mxu0 0.0
    %88 = vmatpush1.msra.mxu0 0.0
    %89 = vmatprep.subr.mxu0 0.0
    %90 = vmatpush1.msra.mxu0 0.0
    %91 = vmatprep.subr.mxu0 0.0
    %92 = vmatpush1.msra.mxu0 0.0
    %93 = vmatprep.subr.mxu0 0.0
    %94 = vmatpush1.msra.mxu0 0.0
    %95 = vmatprep.subr.mxu0 0.0
    %96 = vmatpush1.msra.mxu0 0.0
    %97 = vmatprep.subr.mxu0 0.0
    %98 = vmatpush1.msra.mxu0 0.0
    %99 = vmatprep.subr.mxu0 0.0
    %100 = vmatpush1.msra.mxu0 0.0
    %101 = vmatprep.subr.mxu0 0.0
    %102 = vmatpush1.msra.mxu0 0.0
    %103 = vmatprep.subr.mxu0 0.0
    %104 = vmatpush1.msra.mxu0 0.0
    %105 = vmatprep.subr.mxu0 0.0
    %106 = vmatpush1.msra.mxu0 0.0
    %107 = vmatprep.subr.mxu0 0.0
    %108 = vmatpush1.msra.mxu0 0.0
    %109 = vmatprep.subr.mxu0 0.0
    %110 = vmatpush1.msra.mxu0 0.0
    %111 = vmatprep.subr.mxu0 0.0
    %112 = vmatpush1.msra.mxu0 0.0
    %113 = vmatprep.subr.mxu0 0.0
    %114 = vmatpush1.msra.mxu0 0.0
    %115 = vmatprep.subr.mxu0 0.0
    %116 = vmatpush1.msra.mxu0 0.0
    %117 = vmatprep.subr.mxu0 0.0
    %118 = vmatpush1.msra.mxu0 0.0
    %119 = vmatprep.subr.mxu0 0.0
    %120 = vmatpush1.msra.mxu0 0.0
    %121 = vmatprep.subr.mxu0 0.0
    %122 = vmatpush1.msra.mxu0 0.0
    %123 = vmatprep.subr.mxu0 0.0
    %124 = vmatpush1.msra.mxu0 0.0
    %125 = vmatprep.subr.mxu0 0.0
    %126 = vmatpush1.msra.mxu0 0.0
    %127 = vmatprep.mubr.f32.mxu0 0.0
    %128 = vmatmul.mubr.f32.gmra.mrb[0].mxu0 %v54
    %v129 = vpop.f32.mrb[0].mxu0
    %v130 = vadd.f32 %v45, %v129
    %v131 = vpop.f32.mrb[0].mxu0
    %132 = vmatprep.mubr.f32.mxu0 0.0
    %133 = vmatmul.mubr.f32.gmra.mrb[0].mxu0 %v57
    %v134 = vpop.f32.mrb[0].mxu0
    %v135 = vadd.f32 %v50, %v134
    %v136 = vpop.f32.mrb[0].mxu0
    %137 = vdwg.mxu0
    %v138 = vmax.f32 %v130, 0.0
    %v139 = vmax.f32 %v135, 0.0
    %v140 = vld [vmem:[%s3] sm:$0x3]
    %v141 = vld [vmem:[%s4] sm:$0x3]
    %143 = vset.pattern.permute.xlu0 0
    %144 = vperm.xlu0 %143, %v141
    %v145 = vpop.permute.xlu0 %144
    %vm147 = vcmask 121856
    %v149 = vsel %vm147, %v140, 0
    %vm151 = vcmask 1046528
    %v153 = vsel %vm151, %v139, 0
    %155 = vmatprep.subr.mxu0 0.0
    %156 = vmatpush1.msra.mxu0 %v138
    %157 = vmatprep.subr.mxu0 0.0
    %158 = vmatpush1.msra.mxu0 %v153
    %159 = vmatprep.subr.mxu0 0.0
    %160 = vmatpush1.msra.mxu0 0.0
    %161 = vmatprep.subr.mxu0 0.0
    %162 = vmatpush1.msra.mxu0 0.0
    %163 = vmatprep.subr.mxu0 0.0
    %164 = vmatpush1.msra.mxu0 0.0
    %165 = vmatprep.subr.mxu0 0.0
    %166 = vmatpush1.msra.mxu0 0.0
    %167 = vmatprep.subr.mxu0 0.0
    %168 = vmatpush1.msra.mxu0 0.0
    %169 = vmatprep.subr.mxu0 0.0
    %170 = vmatpush1.msra.mxu0 0.0
    %171 = vmatprep.subr.mxu0 0.0
    %172 = vmatpush1.msra.mxu0 0.0
    %173 = vmatprep.subr.mxu0 0.0
    %174 = vmatpush1.msra.mxu0 0.0
    %175 = vmatprep.subr.mxu0 0.0
    %176 = vmatpush1.msra.mxu0 0.0
    %177 = vmatprep.subr.mxu0 0.0
    %178 = vmatpush1.msra.mxu0 0.0
    %179 = vmatprep.subr.mxu0 0.0
    %180 = vmatpush1.msra.mxu0 0.0
    %181 = vmatprep.subr.mxu0 0.0
    %182 = vmatpush1.msra.mxu0 0.0
    %183 = vmatprep.subr.mxu0 0.0
    %184 = vmatpush1.msra.mxu0 0.0
    %185 = vmatprep.subr.mxu0 0.0
    %186 = vmatpush1.msra.mxu0 0.0
    %187 = vmatprep.subr.mxu0 0.0
    %188 = vmatpush1.msra.mxu0 0.0
    %189 = vmatprep.subr.mxu0 0.0
    %190 = vmatpush1.msra.mxu0 0.0
    %191 = vmatprep.subr.mxu0 0.0
    %192 = vmatpush1.msra.mxu0 0.0
    %193 = vmatprep.subr.mxu0 0.0
    %194 = vmatpush1.msra.mxu0 0.0
    %195 = vmatprep.subr.mxu0 0.0
    %196 = vmatpush1.msra.mxu0 0.0
    %197 = vmatprep.subr.mxu0 0.0
    %198 = vmatpush1.msra.mxu0 0.0
    %199 = vmatprep.subr.mxu0 0.0
    %200 = vmatpush1.msra.mxu0 0.0
    %201 = vmatprep.subr.mxu0 0.0
    %202 = vmatpush1.msra.mxu0 0.0
    %203 = vmatprep.subr.mxu0 0.0
    %204 = vmatpush1.msra.mxu0 0.0
    %205 = vmatprep.subr.mxu0 0.0
    %206 = vmatpush1.msra.mxu0 0.0
    %207 = vmatprep.subr.mxu0 0.0
    %208 = vmatpush1.msra.mxu0 0.0
    %209 = vmatprep.subr.mxu0 0.0
    %210 = vmatpush1.msra.mxu0 0.0
    %211 = vmatprep.subr.mxu0 0.0
    %212 = vmatpush1.msra.mxu0 0.0
    %213 = vmatprep.subr.mxu0 0.0
    %214 = vmatpush1.msra.mxu0 0.0
    %215 = vmatprep.subr.mxu0 0.0
    %216 = vmatpush1.msra.mxu0 0.0
    %217 = vmatprep.subr.mxu0 0.0
    %218 = vmatpush1.msra.mxu0 0.0
    %219 = vmatprep.mubr.f32.mxu0 0.0
    %220 = vmatmul.mubr.f32.gmra.mrb[0].mxu0 %v149
    %v221 = vpop.f32.mrb[0].mxu0
    %v222 = vadd.f32 %v145, %v221
    %v223 = vpop.f32.mrb[0].mxu0
    %224 = vdwg.mxu0
    %225 = vst [vmem:[#allocation5] sm:$0x3] %v222
    // Predicated region
    $region26: #{tpu_custom_call.1} parent=1 // pred_check
      _
    $region27: #{tpu_custom_call.1} parent=1 // pred_check_branch
      %227 = sbr.rel (0) target = $region29
    $region28: #{tpu_custom_call.1} parent=1 // pred_region
      %s229 = ssub.s32 32, 32
      %230 = vsyncadd [#allocation4], %s229
      %s232 = sshll.u32 [#allocation5], 4
      %s233 = int_to_ptr.vmem [resolvable:$true] %s232
      %235 = dma.vmem_to_hbm [thread:$0]  %s233, 32, %s5, [#allocation4]
    $region29: #{tpu_custom_call.1} parent=1 // pred_fallthru
      _
    // Predicated region
    $region30: #{tpu_custom_call.1} parent=1 // pred_check
      _
    $region31: #{tpu_custom_call.1} parent=1 // pred_check_branch
      %237 = sbr.rel (0) target = $region33
    $region32: #{tpu_custom_call.1} parent=1 // pred_region
      %238 = dma.done [#allocation4], 32
    $region33: #{tpu_custom_call.1} parent=1 // pred_fallthru
      _
    %239 = vsyncpa [#allocation3], 1
    %240 = vsyncpa [#allocation4], 1

</llo_original>
